<compile_context>
chip_gen: v7x
topology: tpu7x:2x2x1
jax: 0.10.0
libtpu: 0.0.40
codegen_flags: <defaults>
</compile_context>

<pallas_src>
import jax
import jax.numpy as jnp
import numpy as np
from jax.experimental import pallas as pl
from jax.experimental.pallas import tpu as pltpu


def _dwt_kernel(xq_ref, o_ref):
    """Haar butterfly on one block.

    Block layout: (1, 4, Rt, Lc).  Axis 1 holds the four polyphase samples
    (same naming as the PyTorch dwt_init):
      0: x1 = even rows, even cols      1: x2 = odd rows, even cols
      2: x3 = even rows, odd cols       3: x4 = odd rows, odd cols
    Output bands on the same axis: 0: LL   1: HL   2: LH   3: HH.
    """
    f32 = jnp.float32
    x1 = xq_ref[0, 0].astype(f32)
    x2 = xq_ref[0, 1].astype(f32)
    x3 = xq_ref[0, 2].astype(f32)
    x4 = xq_ref[0, 3].astype(f32)

    # Two-stage factorized butterfly with the 1/2 scaling folded in
    # (12 vector ops per element instead of 16).
    s_e = (x1 + x3) * 0.5          # even-row column-pair sum
    d_e = (x3 - x1) * 0.5          # even-row column-pair diff
    s_o = (x2 + x4) * 0.5          # odd-row  column-pair sum
    d_o = (x4 - x2) * 0.5          # odd-row  column-pair diff

    dt = o_ref.dtype
    o_ref[0, 0] = (s_e + s_o).astype(dt)   # LL =  x1 + x2 + x3 + x4  (/2)
    o_ref[0, 1] = (d_e + d_o).astype(dt)   # HL = -x1 - x2 + x3 + x4  (/2)
    o_ref[0, 2] = (s_o - s_e).astype(dt)   # LH = -x1 + x2 - x3 + x4  (/2)
    o_ref[0, 3] = (d_o - d_e).astype(dt)   # HH =  x1 - x2 - x3 + x4  (/2)


def _choose_tiling(L):
    """Factor L = R * Lc with Lc a lane-dense multiple of 128 when possible,
    then pick a row block Rt so one block is ~2 MiB and there are >=4 chunks
    when the shape allows (keeps both v7x cores busy with a pipeline)."""
    Lc = None
    for cand in (1024, 512, 256, 128):
        if L % cand == 0:
            Lc = cand
            break
    if Lc is None:        # L not a multiple of 128: single-lane-row fallback
        return 1, L, 1
    R = L // Lc
    target_rows = max(8, min((128 * 1024) // Lc, pl.cdiv(R, 4)))
    Rt = min(R, target_rows)
    if Rt >= 8:
        Rt -= Rt % 8      # keep the sublane dim a multiple of 8
    return R, Lc, Rt


@jax.jit
def dwt_pallas(x):
    """x: (N, C, H, W) array (NCHW).  Returns (N, 4*C, H//2, W//2), matching
    torch.cat((LL, HL, LH, HH), dim=1) of the PyTorch DWT module."""
    N, C, H, W = x.shape
    assert H % 2 == 0 and W % 2 == 0, "H and W must be even"
    H2, W2 = H // 2, W // 2
    L = C * H2 * W2

    # Polyphase deinterleave: a single fused XLA gather/transpose feeding the
    # kernel (see TODO at the top of the file about fusing it in-kernel).
    xr = x.reshape(N, C, H2, 2, W2, 2)
    x1 = xr[:, :, :, 0, :, 0]   # even rows, even cols
    x2 = xr[:, :, :, 1, :, 0]   # odd  rows, even cols
    x3 = xr[:, :, :, 0, :, 1]   # even rows, odd  cols
    x4 = xr[:, :, :, 1, :, 1]   # odd  rows, odd  cols
    xq = jnp.stack([x1, x2, x3, x4], axis=1)          # (N, 4, C, H2, W2)

    # Lane-dense view for the kernel (free reshape): (N, 4, R, Lc).
    R, Lc, Rt = _choose_tiling(L)
    xq = xq.reshape(N, 4, R, Lc)

    grid = (N, pl.cdiv(R, Rt))
    spec = pl.BlockSpec((1, 4, Rt, Lc), lambda n, r: (n, 0, r, 0))

    out = pl.pallas_call(
        _dwt_kernel,
        out_shape=jax.ShapeDtypeStruct((N, 4, R, Lc), x.dtype),
        grid=grid,
        in_specs=[spec],
        out_specs=spec,
        # xq is a throwaway temporary with the same shape/dtype as the output:
        # reuse its HBM buffer instead of allocating another full-size array.
        input_output_aliases={0: 0},
        compiler_params=pltpu.CompilerParams(
            dimension_semantics=("parallel", "parallel")),
    )(xq)

    # (N, 4, R, Lc) == (N, 4, C, H2, W2) -> (N, 4*C, H2, W2): band-major
    # channel concat, identical to torch.cat((LL, HL, LH, HH), dim=1).
    return out.reshape(N, 4 * C, H2, W2)


def dwt_reference(x):
    """Pure-jnp transcription of the PyTorch dwt_init, for verification."""
    x01 = x[:, :, 0::2, :] / 2
    x02 = x[:, :, 1::2, :] / 2
    x1 = x01[:, :, :, 0::2]
    x2 = x02[:, :, :, 0::2]
    x3 = x01[:, :, :, 1::2]
    x4 = x02[:, :, :, 1::2]
    x_LL = x1 + x2 + x3 + x4
    x_HL = -x1 - x2 + x3 + x4
    x_LH = -x1 + x2 - x3 + x4
    x_HH = x1 - x2 - x3 + x4
    return jnp.concatenate((x_LL, x_HL, x_LH, x_HH), axis=1)


if __name__ == "__main__":
    key = jax.random.PRNGKey(0)
    N, C, H, W = 2, 4, 16, 16
    x = jax.random.normal(key, (N, C, H, W), dtype=jnp.float32)

    y = jax.block_until_ready(dwt_pallas(x))
    y_ref = dwt_reference(x)

    assert y.shape == (N, 4 * C, H // 2, W // 2), y.shape
    np.testing.assert_allclose(np.asarray(y), np.asarray(y_ref),
                               rtol=1e-5, atol=1e-5)
    print("KERNEL_OK")
</pallas_src>

<mosaic_0001>
module attributes {stable_mosaic.version = 11 : i64} {
  func.func @_dwt_kernel(%arg0: i32, %arg1: i32, %arg2: memref<1x4x1x256xf32, #tpu.memory_space<vmem>>, %arg3: memref<1x4x1x256xf32, #tpu.memory_space<vmem>>) attributes {dimension_semantics = [#tpu.dimension_semantics<parallel>, #tpu.dimension_semantics<parallel>], iteration_bounds = array<i64: 2, 1>, scalar_prefetch = 0 : i64, scratch_operands = 0 : i64, tpu.core_type = #tpu.core_type<tc>, window_params = [{transform_indices = @transform_0, window_bounds = array<i64: 1, 4, 1, 256>}, {transform_indices = @transform_1, window_bounds = array<i64: 1, 4, 1, 256>}]} {
    %c0 = arith.constant 0 : index
    %c0_0 = arith.constant 0 : index
    %c0_1 = arith.constant 0 : index
    %c0_2 = arith.constant 0 : index
    %0 = vector.load %arg2[%c0, %c0_0, %c0_1, %c0_2] : memref<1x4x1x256xf32, #tpu.memory_space<vmem>>, vector<1x1x1x256xf32>
    %1 = vector.shape_cast %0 : vector<1x1x1x256xf32> to vector<1x256xf32>
    %c0_3 = arith.constant 0 : index
    %c1 = arith.constant 1 : index
    %c0_4 = arith.constant 0 : index
    %c0_5 = arith.constant 0 : index
    %2 = vector.load %arg2[%c0_3, %c1, %c0_4, %c0_5] : memref<1x4x1x256xf32, #tpu.memory_space<vmem>>, vector<1x1x1x256xf32>
    %3 = vector.shape_cast %2 : vector<1x1x1x256xf32> to vector<1x256xf32>
    %c0_6 = arith.constant 0 : index
    %c2 = arith.constant 2 : index
    %c0_7 = arith.constant 0 : index
    %c0_8 = arith.constant 0 : index
    %4 = vector.load %arg2[%c0_6, %c2, %c0_7, %c0_8] : memref<1x4x1x256xf32, #tpu.memory_space<vmem>>, vector<1x1x1x256xf32>
    %5 = vector.shape_cast %4 : vector<1x1x1x256xf32> to vector<1x256xf32>
    %c0_9 = arith.constant 0 : index
    %c3 = arith.constant 3 : index
    %c0_10 = arith.constant 0 : index
    %c0_11 = arith.constant 0 : index
    %6 = vector.load %arg2[%c0_9, %c3, %c0_10, %c0_11] : memref<1x4x1x256xf32, #tpu.memory_space<vmem>>, vector<1x1x1x256xf32>
    %7 = vector.shape_cast %6 : vector<1x1x1x256xf32> to vector<1x256xf32>
    %8 = arith.addf %1, %5 : vector<1x256xf32>
    %cst = arith.constant 5.000000e-01 : f32
    %9 = vector.broadcast %cst : f32 to vector<1x256xf32>
    %10 = arith.mulf %8, %9 : vector<1x256xf32>
    %11 = arith.subf %5, %1 : vector<1x256xf32>
    %cst_12 = arith.constant 5.000000e-01 : f32
    %12 = vector.broadcast %cst_12 : f32 to vector<1x256xf32>
    %13 = arith.mulf %11, %12 : vector<1x256xf32>
    %14 = arith.addf %3, %7 : vector<1x256xf32>
    %cst_13 = arith.constant 5.000000e-01 : f32
    %15 = vector.broadcast %cst_13 : f32 to vector<1x256xf32>
    %16 = arith.mulf %14, %15 : vector<1x256xf32>
    %17 = arith.subf %7, %3 : vector<1x256xf32>
    %cst_14 = arith.constant 5.000000e-01 : f32
    %18 = vector.broadcast %cst_14 : f32 to vector<1x256xf32>
    %19 = arith.mulf %17, %18 : vector<1x256xf32>
    %20 = arith.addf %10, %16 : vector<1x256xf32>
    %c0_15 = arith.constant 0 : index
    %c0_16 = arith.constant 0 : index
    %c0_17 = arith.constant 0 : index
    %c0_18 = arith.constant 0 : index
    %21 = vector.load %arg3[%c0_15, %c0_16, %c0_17, %c0_18] : memref<1x4x1x256xf32, #tpu.memory_space<vmem>>, vector<1x1x1x256xf32>
    %22 = vector.shape_cast %21 : vector<1x1x1x256xf32> to vector<1x256xf32>
    %23 = vector.shape_cast %20 : vector<1x256xf32> to vector<1x1x1x256xf32>
    tpu.vector_store %arg3[%c0_15, %c0_16, %c0_17, %c0_18], %23 {strides = array<i32>} : memref<1x4x1x256xf32, #tpu.memory_space<vmem>>, vector<1x1x1x256xf32>,
    %24 = arith.addf %13, %19 : vector<1x256xf32>
    %c0_19 = arith.constant 0 : index
    %c1_20 = arith.constant 1 : index
    %c0_21 = arith.constant 0 : index
    %c0_22 = arith.constant 0 : index
    %25 = vector.load %arg3[%c0_19, %c1_20, %c0_21, %c0_22] : memref<1x4x1x256xf32, #tpu.memory_space<vmem>>, vector<1x1x1x256xf32>
    %26 = vector.shape_cast %25 : vector<1x1x1x256xf32> to vector<1x256xf32>
    %27 = vector.shape_cast %24 : vector<1x256xf32> to vector<1x1x1x256xf32>
    tpu.vector_store %arg3[%c0_19, %c1_20, %c0_21, %c0_22], %27 {strides = array<i32>} : memref<1x4x1x256xf32, #tpu.memory_space<vmem>>, vector<1x1x1x256xf32>,
    %28 = arith.subf %16, %10 : vector<1x256xf32>
    %c0_23 = arith.constant 0 : index
    %c2_24 = arith.constant 2 : index
    %c0_25 = arith.constant 0 : index
    %c0_26 = arith.constant 0 : index
    %29 = vector.load %arg3[%c0_23, %c2_24, %c0_25, %c0_26] : memref<1x4x1x256xf32, #tpu.memory_space<vmem>>, vector<1x1x1x256xf32>
    %30 = vector.shape_cast %29 : vector<1x1x1x256xf32> to vector<1x256xf32>
    %31 = vector.shape_cast %28 : vector<1x256xf32> to vector<1x1x1x256xf32>
    tpu.vector_store %arg3[%c0_23, %c2_24, %c0_25, %c0_26], %31 {strides = array<i32>} : memref<1x4x1x256xf32, #tpu.memory_space<vmem>>, vector<1x1x1x256xf32>,
    %32 = arith.subf %19, %13 : vector<1x256xf32>
    %c0_27 = arith.constant 0 : index
    %c3_28 = arith.constant 3 : index
    %c0_29 = arith.constant 0 : index
    %c0_30 = arith.constant 0 : index
    %33 = vector.load %arg3[%c0_27, %c3_28, %c0_29, %c0_30] : memref<1x4x1x256xf32, #tpu.memory_space<vmem>>, vector<1x1x1x256xf32>
    %34 = vector.shape_cast %33 : vector<1x1x1x256xf32> to vector<1x256xf32>
    %35 = vector.shape_cast %32 : vector<1x256xf32> to vector<1x1x1x256xf32>
    tpu.vector_store %arg3[%c0_27, %c3_28, %c0_29, %c0_30], %35 {strides = array<i32>} : memref<1x4x1x256xf32, #tpu.memory_space<vmem>>, vector<1x1x1x256xf32>,
    return
  }
  func.func @transform_0(%arg0: i32, %arg1: i32) -> (i32, i32, i32, i32) {
    %c0_i32 = arith.constant 0 : i32
    %c0_i32_0 = arith.constant 0 : i32
    %c0_i32_1 = arith.constant 0 : i32
    return %arg0, %c0_i32, %arg1, %c0_i32_0 : i32, i32, i32, i32
  }
  func.func @transform_1(%arg0: i32, %arg1: i32) -> (i32, i32, i32, i32) {
    %c0_i32 = arith.constant 0 : i32
    %c0_i32_0 = arith.constant 0 : i32
    %c0_i32_1 = arith.constant 0 : i32
    return %arg0, %c0_i32, %arg1, %c0_i32_0 : i32, i32, i32, i32
  }
}

</mosaic_0001>

<llo_original>
// kernel: dwt_pallas.1
$region0: #{dwt_pallas.1}
  #allocation0 [shape = 'u32[]', space=smem, size = 0x4, offset = 0x4, fixed_abs, tag = 'smem constant byte address 0x4 - core index']
  #allocation1 [shape = 'u32[144,128]{1,0:T(1,128)}', space=vmem, size = 0x12000, scoped, tag = 'internal scratch']
  %s0 = inlined_call_operand.vmem [shape: f32[2,4,1,256], index: 0, kind: input, shape index: {}, may-alias: {0,1}]
  %s1 = inlined_call_operand.vmem [shape: f32[2,4,1,256], index: 1, kind: output, shape index: {}, may-alias: {0,1}]
  %s2 = sld [smem:[#allocation0]]
  $region37: #{dwt_pallas.1} parent=0
    _
  %s4 = ssub.s32 1, %s2
  %s5 = scalar_select 0, %s4, %s2
  loop: start=0, step=1, limit=4
  $region2: #{dwt_pallas.1} parent=0 // loop_pre_header
    _
  $region3: #{dwt_pallas.1} parent=0 // loop_header
    %s7 = sphi 0, %s11
    %p8 = scmp.ge.s32.totalorder %s7, 4
    %s14 = sphi 0, %s26
    %s15 = sphi 0, %s22
    %s16 = sphi 0, %s14
    %s17 = sphi 0, %s15
    %s18 = sphi 0, %s16
    %s19 = sphi 0, %s17
    %s31 = sphi 0, %s33
    %s34 = sphi 0, %s31
    %s35 = sphi 0, %s34
    %s51 = sphi 0, %s35
    %s59 = sphi 0, %s61
    %s62 = sphi 0, %s59
    %s63 = sphi 0, %s62
    %s79 = sphi 0, %s63
  $region4: #{dwt_pallas.1} parent=0 // loop_header_branch
    %10 = sbr.rel (%p8) target = $region8
  $region5: #{dwt_pallas.1} parent=0 // loop_body
    %s12 = ssub.s32 %s7, 1
    %s13 = ssub.s32 %s7, 2
    %s20 = sadd.s32 1, %s15
    %p21 = scmp.ge.s32.totalorder %s20, 1
    %s22 = scalar_select %p21, 0, %s20
    %s23 = sadd.s32 1, %s14
    %s24 = scalar_select %p21, %s23, %s14
    %p25 = scmp.ge.s32.totalorder %s24, 2
    %s26 = scalar_select %p25, 0, %s24
    %s27 = ssub.s32 %s14, %s26
    %s28 = ssub.s32 %s15, %s22
    %s29 = sor.u32 %s27, %s28
    %p30 = scmp.eq.s32.totalorder %s29, 0
    %s32 = sadd.s32 %s31, 1
    %s33 = scalar_select %p30, %s31, %s32
    %p36 = pneg %p30
    %p37 = scmp.eq.s32.totalorder %s7, 1
    %p38 = por %p36, %p37
    %p39 = scmp.ne.s32.totalorder %s31, %s34
    %p40 = scmp.eq.s32.totalorder %s7, 0
    %p41 = por %p39, %p40
    %p42 = scmp.ne.s32.totalorder %s31, %s34
    %p43 = scmp.eq.s32.totalorder %s12, 1
    %p44 = por %p42, %p43
    %p45 = scmp.ne.s32.totalorder %s34, %s35
    %p46 = scmp.eq.s32.totalorder %s12, 0
    %p47 = por %p45, %p46
    %p48 = scmp.ne.s32.totalorder %s34, %s35
    %p49 = scmp.eq.s32.totalorder %s13, 1
    %p50 = por %p48, %p49
    %p52 = scmp.ne.s32.totalorder %s35, %s51
    %p53 = scmp.eq.s32.totalorder %s13, 0
    %p54 = por %p52, %p53
    %s55 = ssub.s32 %s14, %s26
    %s56 = ssub.s32 %s15, %s22
    %s57 = sor.u32 %s55, %s56
    %p58 = scmp.eq.s32.totalorder %s57, 0
    %s60 = sadd.s32 %s59, 1
    %s61 = scalar_select %p58, %s59, %s60
    %p64 = pneg %p58
    %p65 = scmp.eq.s32.totalorder %s7, 1
    %p66 = por %p64, %p65
    %p67 = scmp.ne.s32.totalorder %s59, %s62
    %p68 = scmp.eq.s32.totalorder %s7, 0
    %p69 = por %p67, %p68
    %p70 = scmp.ne.s32.totalorder %s59, %s62
    %p71 = scmp.eq.s32.totalorder %s12, 1
    %p72 = por %p70, %p71
    %p73 = scmp.ne.s32.totalorder %s62, %s63
    %p74 = scmp.eq.s32.totalorder %s12, 0
    %p75 = por %p73, %p74
    %p76 = scmp.ne.s32.totalorder %s62, %s63
    %p77 = scmp.eq.s32.totalorder %s13, 1
    %p78 = por %p76, %p77
    %p80 = scmp.ne.s32.totalorder %s63, %s79
    %p81 = scmp.eq.s32.totalorder %s13, 0
    %p82 = por %p80, %p81
    %p83 = scmp.le.s32.totalorder 1, %s7
    %p84 = scmp.lt.s32.totalorder %s7, 3
    %p85 = pnand %p83, %p84
    %p86 = pneg %p85
    // Predicated region
    $region9: #{dwt_pallas.1} parent=5 // pred_check
      _
    $region10: #{dwt_pallas.1} parent=5 // pred_check_branch
      %88 = sbr.rel (%p85) target = $region12
    $region11: #{dwt_pallas.1} parent=5 // pred_region
      %s89 = ssub.s32 %s7, 1
    $region12: #{dwt_pallas.1} parent=5 // pred_fallthru
      _
    %p90 = scmp.lt.s32.totalorder %s7, 2
    // Predicated region
    $region13: #{dwt_pallas.1} parent=5 // pred_check
      %p91 = pneg %p90
    $region14: #{dwt_pallas.1} parent=5 // pred_check_branch
      %93 = sbr.rel (%p91) target = $region16
    $region15: #{dwt_pallas.1} parent=5 // pred_region
      // Predicated region
      $region17: #{dwt_pallas.1} parent=15 // pred_check
        %p94 = pneg %p41
      $region18: #{dwt_pallas.1} parent=15 // pred_check_branch
        %96 = sbr.rel (%p94) target = $region20
      $region19: #{dwt_pallas.1} parent=15 // pred_region
        %p97 = scmp.lt.s32.totalorder %s14, 1
        %s98 = scalar_select %p97, %s14, 1
        %p99 = scmp.lt.s32.totalorder %s15, 0
        %s100 = scalar_select %p99, %s15, 0
        %s101 = smul.addr %s100, 2
        %s102 = smul.addr %s98, 8
        %s103 = sadd.s32 %s101, %s102
        %s104 = scalar_lea.vmem %s0, %s103
      $region20: #{dwt_pallas.1} parent=15 // pred_fallthru
        _
    $region16: #{dwt_pallas.1} parent=5 // pred_fallthru
      _
    %p105 = scmp.le.s32.totalorder 1, %s7
    %p106 = scmp.lt.s32.totalorder %s7, 3
    %p107 = pnand %p105, %p106
    %p108 = pneg %p107
    // Predicated region
    $region21: #{dwt_pallas.1} parent=5 // pred_check
      _
    $region22: #{dwt_pallas.1} parent=5 // pred_check_branch
      %110 = sbr.rel (%p107) target = $region24
    $region23: #{dwt_pallas.1} parent=5 // pred_region
      %s111 = ssub.s32 %s7, 1
      %p112 = scmp.lt.s32.totalorder %s16, 1
      %s113 = scalar_select %p112, %s16, 1
      %p114 = scmp.lt.s32.totalorder %s17, 0
      %s115 = scalar_select %p114, %s17, 0
      %s116 = smul.addr %s115, 2
      %s117 = smul.addr %s113, 8
      %s118 = sadd.s32 %s116, %s117
      %s119 = scalar_lea.vmem %s0, %s118
      %p120 = pneg %p47
      %p121 = pneg %p44
      %p122 = pneg %p75
      %p123 = pneg %p72
      %p124 = scmp.lt.s32.totalorder %s16, 1
      %s125 = scalar_select %p124, %s16, 1
      %p126 = scmp.lt.s32.totalorder %s17, 0
      %s127 = scalar_select %p126, %s17, 0
      %s128 = smul.addr %s127, 2
      %s129 = smul.addr %s125, 8
      %s130 = sadd.s32 %s128, %s129
      %s131 = scalar_lea.vmem %s1, %s130
      %p132 = scmp.lt.s32.totalorder %s16, 1
      %s133 = scalar_select %p132, %s16, 1
      %p134 = scmp.lt.s32.totalorder %s17, 0
      %s135 = scalar_select %p134, %s17, 0
      %s136 = smul.addr %s135, 2
      %s137 = smul.addr %s133, 8
      %s138 = sadd.s32 %s136, %s137
      %s139 = scalar_lea.vmem %s0, %s138
      %p140 = scmp.lt.s32.totalorder %s16, 1
      %s141 = scalar_select %p140, %s16, 1
      %p142 = scmp.lt.s32.totalorder %s17, 0
      %s143 = scalar_select %p142, %s17, 0
      %s144 = smul.addr %s143, 2
      %s145 = smul.addr %s141, 8
      %s146 = sadd.s32 %s144, %s145
      %s147 = scalar_lea.vmem %s1, %s146
      %v148 = vld [vmem:[%s139] sm:$0x3]
      %s149 = scalar_lea.vmem %s139, 2
      %v150 = vld [vmem:[%s149] sm:$0x3]
      %s151 = scalar_lea.vmem %s139, 4
      %v152 = vld [vmem:[%s151] sm:$0x3]
      %s153 = scalar_lea.vmem %s139, 6
      %v154 = vld [vmem:[%s153] sm:$0x3]
      %v155 = vadd.f32 %v148, %v152
      %v156 = vmul.f32 %v155, 0.5
      %v157 = vsub.f32 %v152, %v148
      %v158 = vmul.f32 %v157, 0.5
      %v159 = vadd.f32 %v150, %v154
      %v160 = vmul.f32 %v159, 0.5
      %v161 = vsub.f32 %v154, %v150
      %v162 = vmul.f32 %v161, 0.5
      %v163 = vadd.f32 %v156, %v160
      %v164 = vlaneseq
      %vm165 = vcmp.ge.s32.totalorder %v164, 0
      %vm166 = vcmp.lt.s32.totalorder %v164, 256
      %vm167 = vmand %vm165, %vm166
      %168 = vst.msk [vmem:[%s147] sm:$0x3] %vm167, %v163
      %v169 = vadd.f32 %v158, %v162
      %s170 = scalar_lea.vmem %s147, 2
      %171 = vst.msk [vmem:[%s170] sm:$0x3] %vm167, %v169
      %v172 = vsub.f32 %v160, %v156
      %s173 = scalar_lea.vmem %s147, 4
      %174 = vst.msk [vmem:[%s173] sm:$0x3] %vm167, %v172
      %v175 = vsub.f32 %v162, %v158
      %s176 = scalar_lea.vmem %s147, 6
      %177 = vst.msk [vmem:[%s176] sm:$0x3] %vm167, %v175
      %p178 = scmp.lt.s32.totalorder %s16, 1
      %s179 = scalar_select %p178, %s16, 1
      %p180 = scmp.lt.s32.totalorder %s17, 0
      %s181 = scalar_select %p180, %s17, 0
      %s182 = smul.addr %s181, 2
      %s183 = smul.addr %s179, 8
      %s184 = sadd.s32 %s182, %s183
      %s185 = scalar_lea.vmem %s1, %s184
      // Predicated region
      $region25: #{dwt_pallas.1} parent=23 // pred_check
        %p186 = pneg %p72
      $region26: #{dwt_pallas.1} parent=23 // pred_check_branch
        %188 = sbr.rel (%p186) target = $region28
      $region27: #{dwt_pallas.1} parent=23 // pred_region
        _
      $region28: #{dwt_pallas.1} parent=23 // pred_fallthru
        _
    $region24: #{dwt_pallas.1} parent=5 // pred_fallthru
      _
    %p189 = scmp.le.s32.totalorder 2, %s7
    // Predicated region
    $region29: #{dwt_pallas.1} parent=5 // pred_check
      %p190 = pneg %p189
    $region30: #{dwt_pallas.1} parent=5 // pred_check_branch
      %192 = sbr.rel (%p190) target = $region32
    $region31: #{dwt_pallas.1} parent=5 // pred_region
      %s193 = ssub.s32 %s7, 2
      // Predicated region
      $region33: #{dwt_pallas.1} parent=31 // pred_check
        %p194 = pneg %p78
      $region34: #{dwt_pallas.1} parent=31 // pred_check_branch
        %196 = sbr.rel (%p194) target = $region36
      $region35: #{dwt_pallas.1} parent=31 // pred_region
        %p197 = scmp.lt.s32.totalorder %s18, 1
        %s198 = scalar_select %p197, %s18, 1
        %p199 = scmp.lt.s32.totalorder %s19, 0
        %s200 = scalar_select %p199, %s19, 0
        %s201 = smul.addr %s200, 2
        %s202 = smul.addr %s198, 8
        %s203 = sadd.s32 %s201, %s202
        %s204 = scalar_lea.vmem %s1, %s203
      $region36: #{dwt_pallas.1} parent=31 // pred_fallthru
        _
    $region32: #{dwt_pallas.1} parent=5 // pred_fallthru
      _
  $region6: #{dwt_pallas.1} parent=0 // loop_footer
    %s11 = sadd.s32 1, %s7
  $region7: #{dwt_pallas.1} parent=0 // loop_footer_branch
    %6 = sbr.rel target = $region3
  $region8: #{dwt_pallas.1} parent=0 // loop_exit
    _

</llo_original>
